<compile_context>
chip_gen: v6e
topology: v6e:2x2x1
jax: 0.10.0
libtpu: 0.0.40
codegen_flags: <defaults>
</compile_context>

<pallas_src>
import jax
import jax.numpy as jnp
import numpy as np
from jax.experimental import pallas as pl
from jax.experimental.pallas import tpu as pltpu

# ---------------------------------------------------------------------------
# Synthetic config standing in for `scheme` / `args`
# ---------------------------------------------------------------------------
BS        = 2            # batch.batch_size
MAX_T     = 3            # batch.max_seq_length -> Conv2d channel dim (=3)
N_AGENTS  = 8            # -> conv "height"
D_OBS     = 8            # per-agent obs features; + eye(n_agents) -> conv "width"
N_FILTERS = 8            # args.alg_args['n_filters']
KERNEL    = (3, 3)       # args.alg_args['kernel']
STRIDE    = (1, 1)       # module's Linear fan-in assumes stride-1 output size
CRITIC_H1 = 64
CRITIC_H2 = 32

H = N_AGENTS                 # obs_height
W = D_OBS + N_AGENTS         # obs_width
# TODO(synk): the original module reads obs_height == obs_width from
# scheme['view_size']; its _build_inputs only shape-checks when
# n_agents == obs_height and d_obs + n_agents == obs_width, so here we treat
# (H, W) = (n_agents, d_obs + n_agents) to keep the forward consistent.
KH, KW = KERNEL
HP = (H - KH) // STRIDE[0] + 1
WP = (W - KW) // STRIDE[1] + 1
P  = HP * WP                 # flattened conv-output spatial positions (=84)
PP = 128                     # lane-padded P (lane-dense conv output / flatten)
K  = 3 * KH * KW             # im2col contraction length (C * kh * kw = 27)


# ---------------------------------------------------------------------------
# Pallas kernel: conv (one batched matmul) + ReLU + fc1 + ReLU + fc2 + ReLU + fc3
# ---------------------------------------------------------------------------
def critic_kernel(pat_ref, wc_ref, bc_ref, w1_ref, b1_ref,
                  w2_ref, b2_ref, w3_ref, b3_ref, out_ref):
    # pat_ref: (BS, K, PP) im2col patches (zero-padded along the P axis)
    # wc_ref : (F, K)          bc_ref: (1, F, 1)
    # w1_ref : (F*PP, H1) (zero rows at padded positions)    b1_ref: (1, H1)
    # w2_ref : (H1, H2)        b2_ref: (1, H2)
    # w3_ref : (H2, 1)         b3_ref: (1, 1)
    # out_ref: (BS, 1)
    bs = pat_ref.shape[0]

    # Conv2d(3, F, kernel, stride) + ReLU over ALL samples as one batched matmul
    wcb = jnp.broadcast_to(wc_ref[...], (bs, N_FILTERS, K))          # hoisted once
    y = jnp.einsum('nfk,nkp->nfp', wcb, pat_ref[...],
                   preferred_element_type=jnp.float32)               # (BS, F, PP)
    y = jnp.maximum(y + bc_ref[...], 0.0)

    # nn.Flatten of NCHW -> (f, p) order; (8,128)->1024 merge is tile-trivial.
    yf = y.reshape(bs, N_FILTERS * PP)                                # (BS, 1024)

    # Linear(F*P, H1) + ReLU — single matmul; padded columns hit zero weights.
    z1 = jnp.maximum(
        jnp.dot(yf, w1_ref[...], preferred_element_type=jnp.float32) + b1_ref[...],
        0.0)                                                          # (BS, H1)

    # Linear(H1, H2) + ReLU
    z2 = jnp.maximum(
        jnp.dot(z1, w2_ref[...], preferred_element_type=jnp.float32) + b2_ref[...],
        0.0)                                                          # (BS, H2)

    # Linear(H2, 1)
    out_ref[...] = (jnp.dot(z2, w3_ref[...], preferred_element_type=jnp.float32)
                    + b3_ref[...])                                    # (BS, 1)


# ---------------------------------------------------------------------------
# Wrapper (glue: im2col patch extraction + parameter re-layout / zero padding)
# ---------------------------------------------------------------------------
def critic_conv_forward(inputs, params):
    """inputs: (BS, 3, H, W) float32, NCHW (same layout PyTorch's Conv2d sees)."""
    wc, bc, w1, b1, w2, b2, w3, b3 = params
    n = inputs.shape[0]
    sh, sw = STRIDE

    # im2col honoring stride:
    # patches[n, c*KH*KW + di*KW + dj, i*WP + j] = inputs[n, c, i*sh+di, j*sw+dj]
    cols = []
    for c in range(3):
        for di in range(KH):
            for dj in range(KW):
                win = inputs[:, c, di::sh, dj::sw][:, :HP, :WP]
                cols.append(win.reshape(n, P))
    patches = jnp.stack(cols, axis=1)                                 # (N, K, P)
    patches = jnp.pad(patches, ((0, 0), (0, 0), (0, PP - P)))         # (N, K, PP)

    wc_r = wc.reshape(N_FILTERS, K)                                   # (F, K), (c,di,dj) order
    bc_r = bc.reshape(1, N_FILTERS, 1)

    # fc1 weight: w1[h, f*P + p] -> (F*PP, H1) with zero rows at padded p >= P,
    # so a single (BS, F*PP) @ (F*PP, H1) matmul matches the NCHW flatten exactly.
    w1_r = w1.T.reshape(N_FILTERS, P, CRITIC_H1)
    w1_r = jnp.pad(w1_r, ((0, 0), (0, PP - P), (0, 0))).reshape(N_FILTERS * PP,
                                                                CRITIC_H1)
    b1_r = b1.reshape(1, CRITIC_H1)
    w2_t = w2.T                                                       # (H1, H2)
    b2_r = b2.reshape(1, CRITIC_H2)
    w3_t = w3.T                                                       # (H2, 1)
    b3_r = b3.reshape(1, 1)

    vspec = pl.BlockSpec(memory_space=pltpu.MemorySpace.VMEM)
    return pl.pallas_call(
        critic_kernel,
        out_shape=jax.ShapeDtypeStruct((n, 1), jnp.float32),
        in_specs=[vspec] * 9,
        out_specs=vspec,
    )(patches, wc_r, bc_r, w1_r, b1_r, w2_t, b2_r, w3_t, b3_r)


# ---------------------------------------------------------------------------
# _build_inputs equivalent (plain JAX glue): concat obs with agent-id eye
# ---------------------------------------------------------------------------
def build_inputs(obs):
    bs, max_t, n_agents, _ = obs.shape
    eye = jnp.broadcast_to(jnp.eye(n_agents, dtype=obs.dtype),
                           (bs, max_t, n_agents, n_agents))
    return jnp.concatenate([obs, eye], axis=-1)              # (bs, max_t, n_agents, d+n)


# ---------------------------------------------------------------------------
# Deterministic parameter init (PyTorch-default-like uniform(-1/sqrt(fan_in), ..))
# ---------------------------------------------------------------------------
def init_params(key):
    ks = jax.random.split(key, 8)

    def u(k, shape, fan_in):
        bound = 1.0 / float(np.sqrt(fan_in))
        return jax.random.uniform(k, shape, jnp.float32, -bound, bound)

    wc = u(ks[0], (N_FILTERS, 3, KH, KW), 3 * KH * KW)
    bc = u(ks[1], (N_FILTERS,),           3 * KH * KW)
    w1 = u(ks[2], (CRITIC_H1, N_FILTERS * P), N_FILTERS * P)
    b1 = u(ks[3], (CRITIC_H1,),               N_FILTERS * P)
    w2 = u(ks[4], (CRITIC_H2, CRITIC_H1), CRITIC_H1)
    b2 = u(ks[5], (CRITIC_H2,),           CRITIC_H1)
    w3 = u(ks[6], (1, CRITIC_H2), CRITIC_H2)
    b3 = u(ks[7], (1,),           CRITIC_H2)
    return (wc, bc, w1, b1, w2, b2, w3, b3)


# ---------------------------------------------------------------------------
# Pure-JAX reference (mirrors the PyTorch forward exactly; HIGHEST precision so
# the all-fp32 kernel can be checked at a tight tolerance)
# ---------------------------------------------------------------------------
def reference_forward(inputs, params):
    wc, bc, w1, b1, w2, b2, w3, b3 = params
    hi = jax.lax.Precision.HIGHEST
    y = jax.lax.conv_general_dilated(inputs, wc, window_strides=STRIDE,
                                     padding='VALID',
                                     dimension_numbers=('NCHW', 'OIHW', 'NCHW'),
                                     precision=hi)
    y = jnp.maximum(y + bc[None, :, None, None], 0.0)
    y = y.reshape(inputs.shape[0], -1)                       # NCHW flatten: (f, i, j)
    z1 = jnp.maximum(jnp.dot(y, w1.T, precision=hi) + b1, 0.0)
    z2 = jnp.maximum(jnp.dot(z1, w2.T, precision=hi) + b2, 0.0)
    return jnp.dot(z2, w3.T, precision=hi) + b3[None, :]


if __name__ == "__main__":
    key = jax.random.PRNGKey(0)
    k_obs, k_par = jax.random.split(key)

    obs = jax.random.normal(k_obs, (BS, MAX_T, N_AGENTS, D_OBS), jnp.float32)
    inputs = build_inputs(obs)                               # (2, 3, 8, 16) NCHW
    params = init_params(k_par)

    value = critic_conv_forward(inputs, params)
    value = jax.block_until_ready(value)

    ref = reference_forward(inputs, params)
    assert value.shape == (BS, 1), value.shape
    # Tight tolerance: all-fp32 kernel vs HIGHEST-precision fp32 reference;
    # catches any flatten-order / layout bug (which would give O(1) errors).
    np.testing.assert_allclose(np.asarray(value), np.asarray(ref),
                               rtol=1e-4, atol=1e-4)
    print("KERNEL_OK")
</pallas_src>

<mosaic_0001>
module attributes {stable_mosaic.version = 11 : i64} {
  func.func @critic_kernel(%arg0: memref<2x27x128xf32, #tpu.memory_space<vmem>>, %arg1: memref<8x27xf32, #tpu.memory_space<vmem>>, %arg2: memref<1x8x1xf32, #tpu.memory_space<vmem>>, %arg3: memref<1024x64xf32, #tpu.memory_space<vmem>>, %arg4: memref<1x64xf32, #tpu.memory_space<vmem>>, %arg5: memref<64x32xf32, #tpu.memory_space<vmem>>, %arg6: memref<1x32xf32, #tpu.memory_space<vmem>>, %arg7: memref<32x1xf32, #tpu.memory_space<vmem>>, %arg8: memref<1x1xf32, #tpu.memory_space<vmem>>, %arg9: memref<2x1xf32, #tpu.memory_space<vmem>>) attributes {dimension_semantics = [], scalar_prefetch = 0 : i64, scratch_operands = 0 : i64, tpu.core_type = #tpu.core_type<tc>} {
    %c0 = arith.constant 0 : index
    %c0_0 = arith.constant 0 : index
    %0 = vector.load %arg1[%c0, %c0_0] : memref<8x27xf32, #tpu.memory_space<vmem>>, vector<8x27xf32>
    %1 = vector.shape_cast %0 : vector<8x27xf32> to vector<1x8x27xf32>
    %2 = vector.broadcast %1 : vector<1x8x27xf32> to vector<2x8x27xf32>
    %c0_1 = arith.constant 0 : index
    %c0_2 = arith.constant 0 : index
    %c0_3 = arith.constant 0 : index
    %3 = vector.load %arg0[%c0_1, %c0_2, %c0_3] : memref<2x27x128xf32, #tpu.memory_space<vmem>>, vector<2x27x128xf32>
    "tpu.trace_start"() <{level = 10 : i32, message = "nfk,nkp->nfp"}> : () -> ()
    %cst = arith.constant dense<0.000000e+00> : vector<2x8x128xf32>
    %4 = tpu.matmul %2, %3, %cst {dimension_numbers = #tpu.dot_dimension_numbers<[2], [1], [1], [2], [0, 0, 0, 1, 1, 2], [0], [0]>} : vector<2x8x27xf32>, vector<2x27x128xf32>, vector<2x8x128xf32> -> vector<2x8x128xf32>
    "tpu.trace_stop"() : () -> ()
    %c0_4 = arith.constant 0 : index
    %c0_5 = arith.constant 0 : index
    %c0_6 = arith.constant 0 : index
    %5 = vector.load %arg2[%c0_4, %c0_5, %c0_6] : memref<1x8x1xf32, #tpu.memory_space<vmem>>, vector<1x8x1xf32>
    %6 = vector.broadcast %5 : vector<1x8x1xf32> to vector<2x8x128xf32>
    %7 = arith.addf %4, %6 : vector<2x8x128xf32>
    %cst_7 = arith.constant 0.000000e+00 : f32
    %8 = vector.broadcast %cst_7 : f32 to vector<2x8x128xf32>
    %9 = arith.maximumf %7, %8 : vector<2x8x128xf32>
    %10 = vector.shape_cast %9 : vector<2x8x128xf32> to vector<2x1024xf32>
    %c0_8 = arith.constant 0 : index
    %c0_9 = arith.constant 0 : index
    %11 = vector.load %arg3[%c0_8, %c0_9] : memref<1024x64xf32, #tpu.memory_space<vmem>>, vector<1024x64xf32>
    %cst_10 = arith.constant dense<0.000000e+00> : vector<2x64xf32>
    %12 = tpu.matmul %10, %11, %cst_10 {dimension_numbers = #tpu.dot_dimension_numbers<[1], [0], [0], [1], [0, 0, 1, 1], [], []>} : vector<2x1024xf32>, vector<1024x64xf32>, vector<2x64xf32> -> vector<2x64xf32>
    %c0_11 = arith.constant 0 : index
    %c0_12 = arith.constant 0 : index
    %13 = vector.load %arg4[%c0_11, %c0_12] : memref<1x64xf32, #tpu.memory_space<vmem>>, vector<1x64xf32>
    %14 = vector.broadcast %13 : vector<1x64xf32> to vector<2x64xf32>
    %15 = arith.addf %12, %14 : vector<2x64xf32>
    %cst_13 = arith.constant 0.000000e+00 : f32
    %16 = vector.broadcast %cst_13 : f32 to vector<2x64xf32>
    %17 = arith.maximumf %15, %16 : vector<2x64xf32>
    %c0_14 = arith.constant 0 : index
    %c0_15 = arith.constant 0 : index
    %18 = vector.load %arg5[%c0_14, %c0_15] : memref<64x32xf32, #tpu.memory_space<vmem>>, vector<64x32xf32>
    %cst_16 = arith.constant dense<0.000000e+00> : vector<2x32xf32>
    %19 = tpu.matmul %17, %18, %cst_16 {dimension_numbers = #tpu.dot_dimension_numbers<[1], [0], [0], [1], [0, 0, 1, 1], [], []>} : vector<2x64xf32>, vector<64x32xf32>, vector<2x32xf32> -> vector<2x32xf32>
    %c0_17 = arith.constant 0 : index
    %c0_18 = arith.constant 0 : index
    %20 = vector.load %arg6[%c0_17, %c0_18] : memref<1x32xf32, #tpu.memory_space<vmem>>, vector<1x32xf32>
    %21 = vector.broadcast %20 : vector<1x32xf32> to vector<2x32xf32>
    %22 = arith.addf %19, %21 : vector<2x32xf32>
    %cst_19 = arith.constant 0.000000e+00 : f32
    %23 = vector.broadcast %cst_19 : f32 to vector<2x32xf32>
    %24 = arith.maximumf %22, %23 : vector<2x32xf32>
    %c0_20 = arith.constant 0 : index
    %c0_21 = arith.constant 0 : index
    %25 = vector.load %arg7[%c0_20, %c0_21] : memref<32x1xf32, #tpu.memory_space<vmem>>, vector<32x1xf32>
    %cst_22 = arith.constant dense<0.000000e+00> : vector<2x1xf32>
    %26 = tpu.matmul %24, %25, %cst_22 {dimension_numbers = #tpu.dot_dimension_numbers<[1], [0], [0], [1], [0, 0, 1, 1], [], []>} : vector<2x32xf32>, vector<32x1xf32>, vector<2x1xf32> -> vector<2x1xf32>
    %c0_23 = arith.constant 0 : index
    %c0_24 = arith.constant 0 : index
    %27 = vector.load %arg8[%c0_23, %c0_24] : memref<1x1xf32, #tpu.memory_space<vmem>>, vector<1x1xf32>
    %28 = vector.broadcast %27 : vector<1x1xf32> to vector<2x1xf32>
    %29 = arith.addf %26, %28 : vector<2x1xf32>
    %c0_25 = arith.constant 0 : index
    %c0_26 = arith.constant 0 : index
    %30 = vector.load %arg9[%c0_25, %c0_26] : memref<2x1xf32, #tpu.memory_space<vmem>>, vector<2x1xf32>
    tpu.vector_store %arg9[%c0_25, %c0_26], %29 {strides = array<i32>} : memref<2x1xf32, #tpu.memory_space<vmem>>, vector<2x1xf32>,
    return
  }
}

</mosaic_0001>

<llo_original>
// kernel: tpu_custom_call.1
$region0: #{tpu_custom_call.1}
  #allocation0 [shape = 'u32[]', space=smem, size = 0x4, offset = 0x4, fixed_abs, tag = 'smem constant byte address 0x4 - core index']
  #allocation1 [shape = 'u32[144,128]{1,0:T(1,128)}', space=vmem, size = 0x12000, scoped, tag = 'internal scratch']
  #allocation2 [shape = 'f32[1,1]{1,0:T(1,128)S(1)}', space=vmem, size = 0x200, scoped, tag = 'scoped memory for tpu_custom_call.1']
  %s0 = inlined_call_operand.vmem [shape: f32[2,27,128], index: 0, kind: input, shape index: {}]
  %s1 = inlined_call_operand.vmem [shape: f32[8,27], index: 1, kind: input, shape index: {}]
  %s2 = inlined_call_operand.vmem [shape: f32[1,8,1], index: 2, kind: input, shape index: {}]
  %s3 = inlined_call_operand.vmem [shape: f32[1024,64], index: 3, kind: input, shape index: {}]
  %s4 = inlined_call_operand.vmem [shape: f32[1,64], index: 4, kind: input, shape index: {}]
  %s5 = inlined_call_operand.vmem [shape: f32[64,32], index: 5, kind: input, shape index: {}]
  %s6 = inlined_call_operand.vmem [shape: f32[1,32], index: 6, kind: input, shape index: {}]
  %s7 = inlined_call_operand.vmem [shape: f32[32,1], index: 7, kind: input, shape index: {}]
  %s8 = inlined_call_operand.<no memory space> [shape: f32[1,1], index: 8, kind: input, shape index: {}]
  %s9 = inlined_call_operand.vmem [shape: f32[2,1], index: 9, kind: output, shape index: {}]
  %s10 = sld [smem:[#allocation0]]
  $region46: #{tpu_custom_call.1} parent=0
    _
  %s12 = ssub.s32 1, %s10
  %s13 = scalar_select 0, %s12, %s10
  %v14 = vstv %s8
  %15 = vst [vmem:[#allocation2] sm:$0x1] %v14
  // Predicated region
  $region2: #{tpu_custom_call.1} parent=0 // pred_check
    _
  $region3: #{tpu_custom_call.1} parent=0 // pred_check_branch
    %17 = sbr.rel (0) target = $region5
  $region4: #{tpu_custom_call.1} parent=0 // pred_region
    _
  $region5: #{tpu_custom_call.1} parent=0 // pred_fallthru
    _
  // Predicated region
  $region6: #{tpu_custom_call.1} parent=0 // pred_check
    _
  $region7: #{tpu_custom_call.1} parent=0 // pred_check_branch
    %19 = sbr.rel (0) target = $region9
  $region8: #{tpu_custom_call.1} parent=0 // pred_region
    _
  $region9: #{tpu_custom_call.1} parent=0 // pred_fallthru
    _
  // Predicated region
  $region10: #{tpu_custom_call.1} parent=0 // pred_check
    _
  $region11: #{tpu_custom_call.1} parent=0 // pred_check_branch
    %21 = sbr.rel (0) target = $region13
  $region12: #{tpu_custom_call.1} parent=0 // pred_region
    _
  $region13: #{tpu_custom_call.1} parent=0 // pred_fallthru
    _
  // Predicated region
  $region14: #{tpu_custom_call.1} parent=0 // pred_check
    _
  $region15: #{tpu_custom_call.1} parent=0 // pred_check_branch
    %23 = sbr.rel (0) target = $region17
  $region16: #{tpu_custom_call.1} parent=0 // pred_region
    _
  $region17: #{tpu_custom_call.1} parent=0 // pred_fallthru
    _
  // Predicated region
  $region18: #{tpu_custom_call.1} parent=0 // pred_check
    _
  $region19: #{tpu_custom_call.1} parent=0 // pred_check_branch
    %25 = sbr.rel (0) target = $region21
  $region20: #{tpu_custom_call.1} parent=0 // pred_region
    _
  $region21: #{tpu_custom_call.1} parent=0 // pred_fallthru
    _
  // Predicated region
  $region22: #{tpu_custom_call.1} parent=0 // pred_check
    _
  $region23: #{tpu_custom_call.1} parent=0 // pred_check_branch
    %27 = sbr.rel (0) target = $region25
  $region24: #{tpu_custom_call.1} parent=0 // pred_region
    _
  $region25: #{tpu_custom_call.1} parent=0 // pred_fallthru
    _
  // Predicated region
  $region26: #{tpu_custom_call.1} parent=0 // pred_check
    _
  $region27: #{tpu_custom_call.1} parent=0 // pred_check_branch
    %29 = sbr.rel (0) target = $region29
  $region28: #{tpu_custom_call.1} parent=0 // pred_region
    _
  $region29: #{tpu_custom_call.1} parent=0 // pred_fallthru
    _
  // Predicated region
  $region30: #{tpu_custom_call.1} parent=0 // pred_check
    _
  $region31: #{tpu_custom_call.1} parent=0 // pred_check_branch
    %31 = sbr.rel (0) target = $region33
  $region32: #{tpu_custom_call.1} parent=0 // pred_region
    _
  $region33: #{tpu_custom_call.1} parent=0 // pred_fallthru
    _
  // Predicated region
  $region34: #{tpu_custom_call.1} parent=0 // pred_check
    _
  $region35: #{tpu_custom_call.1} parent=0 // pred_check_branch
    %33 = sbr.rel (0) target = $region37
  $region36: #{tpu_custom_call.1} parent=0 // pred_region
    _
  $region37: #{tpu_custom_call.1} parent=0 // pred_fallthru
    _
  %v34 = vld [vmem:[%s1] sm:$0xff]
  %v35 = vld [vmem:[%s0] sm:$0xff]
  %v36 = vld [vmem:[%s0 + $0x8] sm:$0xff]
  %v37 = vld [vmem:[%s0 + $0x10] sm:$0xff]
  %v38 = vld [vmem:[%s0 + $0x18] sm:$0x7]
  %v39 = vld [vmem:[%s0 + $0x20] sm:$0xff]
  %v40 = vld [vmem:[%s0 + $0x28] sm:$0xff]
  %v41 = vld [vmem:[%s0 + $0x30] sm:$0xff]
  %v42 = vld [vmem:[%s0 + $0x38] sm:$0x7]
  %v43 = vld [vmem:[%s2] sm:$0xff]
  %45 = vset.pattern.permute.xlu0 0
  %46 = vperm.xlu0 %45, %v43
  %v47 = vpop.permute.xlu0 %46
  %vm49 = vcmask 220160
  %v51 = vsel %vm49, %v34, 0
  %vm53 = vcmask 1042432
  %v55 = vsel %vm53, %v38, 0
  %57 = vmatprep.subr.mxu0 0.0
  %58 = vmatpush1.msra.mxu0 0.0
  %59 = vmatprep.subr.mxu0 0.0
  %60 = vmatpush1.msra.mxu0 0.0
  %61 = vmatprep.subr.mxu0 0.0
  %62 = vmatpush1.msra.mxu0 0.0
  %63 = vmatprep.subr.mxu0 0.0
  %64 = vmatpush1.msra.mxu0 0.0
  %65 = vmatprep.subr.mxu0 0.0
  %66 = vmatpush1.msra.mxu0 0.0
  %67 = vmatprep.subr.mxu0 0.0
  %68 = vmatpush1.msra.mxu0 0.0
  %69 = vmatprep.subr.mxu0 0.0
  %70 = vmatpush1.msra.mxu0 0.0
  %71 = vmatprep.subr.mxu0 0.0
  %72 = vmatpush1.msra.mxu0 0.0
  %73 = vmatprep.subr.mxu0 0.0
  %74 = vmatpush1.msra.mxu0 0.0
  %75 = vmatprep.subr.mxu0 0.0
  %76 = vmatpush1.msra.mxu0 0.0
  %77 = vmatprep.subr.mxu0 0.0
  %78 = vmatpush1.msra.mxu0 0.0
  %79 = vmatprep.subr.mxu0 0.0
  %80 = vmatpush1.msra.mxu0 0.0
  %81 = vmatprep.subr.mxu0 0.0
  %82 = vmatpush1.msra.mxu0 %v55
  %83 = vmatprep.subr.mxu0 0.0
  %84 = vmatpush1.msra.mxu0 %v37
  %85 = vmatprep.subr.mxu0 0.0
  %86 = vmatpush1.msra.mxu0 %v36
  %87 = vmatprep.subr.mxu0 0.0
  %88 = vmatpush1.msra.mxu0 %v35
  %89 = vmatprep.subr.mxu0 0.0
  %90 = vmatpush2.msra.mxu0 0.0
  %91 = vmatprep.subr.mxu0 0.0
  %92 = vmatpush2.msra.mxu0 0.0
  %93 = vmatprep.subr.mxu0 0.0
  %94 = vmatpush2.msra.mxu0 0.0
  %95 = vmatprep.subr.mxu0 0.0
  %96 = vmatpush2.msra.mxu0 0.0
  %97 = vmatprep.subr.mxu0 0.0
  %98 = vmatpush2.msra.mxu0 0.0
  %99 = vmatprep.subr.mxu0 0.0
  %100 = vmatpush2.msra.mxu0 0.0
  %101 = vmatprep.subr.mxu0 0.0
  %102 = vmatpush2.msra.mxu0 0.0
  %103 = vmatprep.subr.mxu0 0.0
  %104 = vmatpush2.msra.mxu0 0.0
  %105 = vmatprep.subr.mxu0 0.0
  %106 = vmatpush2.msra.mxu0 0.0
  %107 = vmatprep.subr.mxu0 0.0
  %108 = vmatpush2.msra.mxu0 0.0
  %109 = vmatprep.subr.mxu0 0.0
  %110 = vmatpush2.msra.mxu0 0.0
  %111 = vmatprep.subr.mxu0 0.0
  %112 = vmatpush2.msra.mxu0 0.0
  %113 = vmatprep.subr.mxu0 0.0
  %114 = vmatpush2.msra.mxu0 0.0
  %115 = vmatprep.subr.mxu0 0.0
  %116 = vmatpush2.msra.mxu0 0.0
  %117 = vmatprep.subr.mxu0 0.0
  %118 = vmatpush2.msra.mxu0 0.0
  %119 = vmatprep.subr.mxu0 0.0
  %120 = vmatpush2.msra.mxu0 0.0
  %121 = vmatprep.mubr.f32.mxu0 0.0
  %122 = vmatmul.mubr.f32.gmra.mxu0 %v51
  %v123 = vpop.f32.mrf.mxu0
  %v124 = vadd.f32 %v47, %v123
  %v125 = vpop.f32.mrf.mxu0
  %126 = vdwg.mxu0
  %v128 = vsel %vm53, %v42, 0
  %130 = vmatprep.subr.mxu0 0.0
  %131 = vmatpush1.msra.mxu0 0.0
  %132 = vmatprep.subr.mxu0 0.0
  %133 = vmatpush1.msra.mxu0 0.0
  %134 = vmatprep.subr.mxu0 0.0
  %135 = vmatpush1.msra.mxu0 0.0
  %136 = vmatprep.subr.mxu0 0.0
  %137 = vmatpush1.msra.mxu0 0.0
  %138 = vmatprep.subr.mxu0 0.0
  %139 = vmatpush1.msra.mxu0 0.0
  %140 = vmatprep.subr.mxu0 0.0
  %141 = vmatpush1.msra.mxu0 0.0
  %142 = vmatprep.subr.mxu0 0.0
  %143 = vmatpush1.msra.mxu0 0.0
  %144 = vmatprep.subr.mxu0 0.0
  %145 = vmatpush1.msra.mxu0 0.0
  %146 = vmatprep.subr.mxu0 0.0
  %147 = vmatpush1.msra.mxu0 0.0
  %148 = vmatprep.subr.mxu0 0.0
  %149 = vmatpush1.msra.mxu0 0.0
  %150 = vmatprep.subr.mxu0 0.0
  %151 = vmatpush1.msra.mxu0 0.0
  %152 = vmatprep.subr.mxu0 0.0
  %153 = vmatpush1.msra.mxu0 0.0
  %154 = vmatprep.subr.mxu0 0.0
  %155 = vmatpush1.msra.mxu0 %v128
  %156 = vmatprep.subr.mxu0 0.0
  %157 = vmatpush1.msra.mxu0 %v41
  %158 = vmatprep.subr.mxu0 0.0
  %159 = vmatpush1.msra.mxu0 %v40
  %160 = vmatprep.subr.mxu0 0.0
  %161 = vmatpush1.msra.mxu0 %v39
  %162 = vmatprep.subr.mxu0 0.0
  %163 = vmatpush2.msra.mxu0 0.0
  %164 = vmatprep.subr.mxu0 0.0
  %165 = vmatpush2.msra.mxu0 0.0
  %166 = vmatprep.subr.mxu0 0.0
  %167 = vmatpush2.msra.mxu0 0.0
  %168 = vmatprep.subr.mxu0 0.0
  %169 = vmatpush2.msra.mxu0 0.0
  %170 = vmatprep.subr.mxu0 0.0
  %171 = vmatpush2.msra.mxu0 0.0
  %172 = vmatprep.subr.mxu0 0.0
  %173 = vmatpush2.msra.mxu0 0.0
  %174 = vmatprep.subr.mxu0 0.0
  %175 = vmatpush2.msra.mxu0 0.0
  %176 = vmatprep.subr.mxu0 0.0
  %177 = vmatpush2.msra.mxu0 0.0
  %178 = vmatprep.subr.mxu0 0.0
  %179 = vmatpush2.msra.mxu0 0.0
  %180 = vmatprep.subr.mxu0 0.0
  %181 = vmatpush2.msra.mxu0 0.0
  %182 = vmatprep.subr.mxu0 0.0
  %183 = vmatpush2.msra.mxu0 0.0
  %184 = vmatprep.subr.mxu0 0.0
  %185 = vmatpush2.msra.mxu0 0.0
  %186 = vmatprep.subr.mxu0 0.0
  %187 = vmatpush2.msra.mxu0 0.0
  %188 = vmatprep.subr.mxu0 0.0
  %189 = vmatpush2.msra.mxu0 0.0
  %190 = vmatprep.subr.mxu0 0.0
  %191 = vmatpush2.msra.mxu0 0.0
  %192 = vmatprep.subr.mxu0 0.0
  %193 = vmatpush2.msra.mxu0 0.0
  %194 = vmatprep.mubr.f32.mxu0 0.0
  %195 = vmatmul.mubr.f32.gmra.mxu0 %v51
  %v196 = vpop.f32.mrf.mxu0
  %v197 = vadd.f32 %v47, %v196
  %v198 = vpop.f32.mrf.mxu0
  %199 = vdwg.mxu0
  %v200 = vmax.f32 %v124, 0.0
  %v201 = vmax.f32 %v197, 0.0
  %v202 = vcombine.high %v200, 0.0
  %v204 = vunpack.c.l.s4 1983009808
  %v205 = vunpack.c.0.s8 %v204
  %v206 = vlaneseq
  %v207 = vshrl.u32 %v206, 7
  %v208 = vsub.s32 %v205, %v207
  %v209 = vrot.slane %v200, %v208
  %v211 = vunpack.c.l.s4 1983009808
  %v212 = vunpack.c.0.s8 %v211
  %v213 = vlaneseq
  %v214 = vshrl.u32 %v213, 7
  %v215 = vsub.s32 %v212, %v214
  %v216 = vrot.slane %v202, %v215
  %v217 = vcombine.high %v201, 0.0
  %v219 = vunpack.c.l.s4 1983009808
  %v220 = vunpack.c.0.s8 %v219
  %v221 = vlaneseq
  %v222 = vshrl.u32 %v221, 7
  %v223 = vsub.s32 %v220, %v222
  %v224 = vrot.slane %v201, %v223
  %v226 = vunpack.c.l.s4 1983009808
  %v227 = vunpack.c.0.s8 %v226
  %v228 = vlaneseq
  %v229 = vshrl.u32 %v228, 7
  %v230 = vsub.s32 %v227, %v229
  %v231 = vrot.slane %v217, %v230
  %v232 = vcombine.low %v209, %v224
  %v233 = vcombine.high %v209, %v224
  %v235 = vunpack.c.l.s4 1934713408
  %v236 = vunpack.c.0.s8 %v235
  %v237 = vlaneseq
  %v238 = vshrl.u32 %v237, 7
  %v239 = vsub.s32 %v236, %v238
  %v240 = vrot.slane %v232, %v239
  %v242 = vunpack.c.l.s4 1934713408
  %v243 = vunpack.c.0.s8 %v242
  %v244 = vlaneseq
  %v245 = vshrl.u32 %v244, 7
  %v246 = vsub.s32 %v243, %v245
  %v247 = vrot.slane %v233, %v246
  %v248 = vcombine.low %v216, %v231
  %v249 = vcombine.high %v216, %v231
  %v251 = vunpack.c.l.s4 1934713408
  %v252 = vunpack.c.0.s8 %v251
  %v253 = vlaneseq
  %v254 = vshrl.u32 %v253, 7
  %v255 = vsub.s32 %v252, %v254
  %v256 = vrot.slane %v248, %v255
  %v258 = vunpack.c.l.s4 1934713408
  %v259 = vunpack.c.0.s8 %v258
  %v260 = vlaneseq
  %v261 = vshrl.u32 %v260, 7
  %v262 = vsub.s32 %v259, %v261
  %v263 = vrot.slane %v249, %v262
  %v264 = vcombine.high %v240, 0.0
  %v265 = vcombine.high %v247, 0.0
  %v266 = vcombine.high %v256, 0.0
  %v267 = vcombine.high %v263, 0.0
  %v268 = vld [vmem:[%s3] sm:$0xff]
  %v269 = vld [vmem:[%s3 + $0x8] sm:$0xff]
  %v270 = vld [vmem:[%s3 + $0x10] sm:$0xff]
  %v271 = vld [vmem:[%s3 + $0x18] sm:$0xff]
  %v272 = vld [vmem:[%s3 + $0x20] sm:$0xff]
  %v273 = vld [vmem:[%s3 + $0x28] sm:$0xff]
  %v274 = vld [vmem:[%s3 + $0x30] sm:$0xff]
  %v275 = vld [vmem:[%s3 + $0x38] sm:$0xff]
  %v276 = vld [vmem:[%s3 + $0x40] sm:$0xff]
  %v277 = vld [vmem:[%s3 + $0x48] sm:$0xff]
  %v278 = vld [vmem:[%s3 + $0x50] sm:$0xff]
  %v279 = vld [vmem:[%s3 + $0x58] sm:$0xff]
  %v280 = vld [vmem:[%s3 + $0x60] sm:$0xff]
  %v281 = vld [vmem:[%s3 + $0x68] sm:$0xff]
  %v282 = vld [vmem:[%s3 + $0x70] sm:$0xff]
  %v283 = vld [vmem:[%s3 + $0x78] sm:$0xff]
  %v284 = vld [vmem:[%s3 + $0x80] sm:$0xff]
  %v285 = vld [vmem:[%s3 + $0x88] sm:$0xff]
  %v286 = vld [vmem:[%s3 + $0x90] sm:$0xff]
  %v287 = vld [vmem:[%s3 + $0x98] sm:$0xff]
  %v288 = vld [vmem:[%s3 + $0xa0] sm:$0xff]
  %v289 = vld [vmem:[%s3 + $0xa8] sm:$0xff]
  %v290 = vld [vmem:[%s3 + $0xb0] sm:$0xff]
  %v291 = vld [vmem:[%s3 + $0xb8] sm:$0xff]
  %v292 = vld [vmem:[%s3 + $0xc0] sm:$0xff]
  %v293 = vld [vmem:[%s3 + $0xc8] sm:$0xff]
  %v294 = vld [vmem:[%s3 + $0xd0] sm:$0xff]
  %v295 = vld [vmem:[%s3 + $0xd8] sm:$0xff]
  %v296 = vld [vmem:[%s3 + $0xe0] sm:$0xff]
  %v297 = vld [vmem:[%s3 + $0xe8] sm:$0xff]
  %v298 = vld [vmem:[%s3 + $0xf0] sm:$0xff]
  %v299 = vld [vmem:[%s3 + $0xf8] sm:$0xff]
  %v300 = vld [vmem:[%s3 + $0x100] sm:$0xff]
  %v301 = vld [vmem:[%s3 + $0x108] sm:$0xff]
  %v302 = vld [vmem:[%s3 + $0x110] sm:$0xff]
  %v303 = vld [vmem:[%s3 + $0x118] sm:$0xff]
  %v304 = vld [vmem:[%s3 + $0x120] sm:$0xff]
  %v305 = vld [vmem:[%s3 + $0x128] sm:$0xff]
  %v306 = vld [vmem:[%s3 + $0x130] sm:$0xff]
  %v307 = vld [vmem:[%s3 + $0x138] sm:$0xff]
  %v308 = vld [vmem:[%s3 + $0x140] sm:$0xff]
  %v309 = vld [vmem:[%s3 + $0x148] sm:$0xff]
  %v310 = vld [vmem:[%s3 + $0x150] sm:$0xff]
  %v311 = vld [vmem:[%s3 + $0x158] sm:$0xff]
  %v312 = vld [vmem:[%s3 + $0x160] sm:$0xff]
  %v313 = vld [vmem:[%s3 + $0x168] sm:$0xff]
  %v314 = vld [vmem:[%s3 + $0x170] sm:$0xff]
  %v315 = vld [vmem:[%s3 + $0x178] sm:$0xff]
  %v316 = vld [vmem:[%s3 + $0x180] sm:$0xff]
  %v317 = vld [vmem:[%s3 + $0x188] sm:$0xff]
  %v318 = vld [vmem:[%s3 + $0x190] sm:$0xff]
  %v319 = vld [vmem:[%s3 + $0x198] sm:$0xff]
  %v320 = vld [vmem:[%s3 + $0x1a0] sm:$0xff]
  %v321 = vld [vmem:[%s3 + $0x1a8] sm:$0xff]
  %v322 = vld [vmem:[%s3 + $0x1b0] sm:$0xff]
  %v323 = vld [vmem:[%s3 + $0x1b8] sm:$0xff]
  %v324 = vld [vmem:[%s3 + $0x1c0] sm:$0xff]
  %v325 = vld [vmem:[%s3 + $0x1c8] sm:$0xff]
  %v326 = vld [vmem:[%s3 + $0x1d0] sm:$0xff]
  %v327 = vld [vmem:[%s3 + $0x1d8] sm:$0xff]
  %v328 = vld [vmem:[%s3 + $0x1e0] sm:$0xff]
  %v329 = vld [vmem:[%s3 + $0x1e8] sm:$0xff]
  %v330 = vld [vmem:[%s3 + $0x1f0] sm:$0xff]
  %v331 = vld [vmem:[%s3 + $0x1f8] sm:$0xff]
  %v332 = vld [vmem:[%s3 + $0x200] sm:$0xff]
  %v333 = vld [vmem:[%s3 + $0x208] sm:$0xff]
  %v334 = vld [vmem:[%s3 + $0x210] sm:$0xff]
  %v335 = vld [vmem:[%s3 + $0x218] sm:$0xff]
  %v336 = vld [vmem:[%s3 + $0x220] sm:$0xff]
  %v337 = vld [vmem:[%s3 + $0x228] sm:$0xff]
  %v338 = vld [vmem:[%s3 + $0x230] sm:$0xff]
  %v339 = vld [vmem:[%s3 + $0x238] sm:$0xff]
  %v340 = vld [vmem:[%s3 + $0x240] sm:$0xff]
  %v341 = vld [vmem:[%s3 + $0x248] sm:$0xff]
  %v342 = vld [vmem:[%s3 + $0x250] sm:$0xff]
  %v343 = vld [vmem:[%s3 + $0x258] sm:$0xff]
  %v344 = vld [vmem:[%s3 + $0x260] sm:$0xff]
  %v345 = vld [vmem:[%s3 + $0x268] sm:$0xff]
  %v346 = vld [vmem:[%s3 + $0x270] sm:$0xff]
  %v347 = vld [vmem:[%s3 + $0x278] sm:$0xff]
  %v348 = vld [vmem:[%s3 + $0x280] sm:$0xff]
  %v349 = vld [vmem:[%s3 + $0x288] sm:$0xff]
  %v350 = vld [vmem:[%s3 + $0x290] sm:$0xff]
  %v351 = vld [vmem:[%s3 + $0x298] sm:$0xff]
  %v352 = vld [vmem:[%s3 + $0x2a0] sm:$0xff]
  %v353 = vld [vmem:[%s3 + $0x2a8] sm:$0xff]
  %v354 = vld [vmem:[%s3 + $0x2b0] sm:$0xff]
  %v355 = vld [vmem:[%s3 + $0x2b8] sm:$0xff]
  %v356 = vld [vmem:[%s3 + $0x2c0] sm:$0xff]
  %v357 = vld [vmem:[%s3 + $0x2c8] sm:$0xff]
  %v358 = vld [vmem:[%s3 + $0x2d0] sm:$0xff]
  %v359 = vld [vmem:[%s3 + $0x2d8] sm:$0xff]
  %v360 = vld [vmem:[%s3 + $0x2e0] sm:$0xff]
  %v361 = vld [vmem:[%s3 + $0x2e8] sm:$0xff]
  %v362 = vld [vmem:[%s3 + $0x2f0] sm:$0xff]
  %v363 = vld [vmem:[%s3 + $0x2f8] sm:$0xff]
  %v364 = vld [vmem:[%s3 + $0x300] sm:$0xff]
  %v365 = vld [vmem:[%s3 + $0x308] sm:$0xff]
  %v366 = vld [vmem:[%s3 + $0x310] sm:$0xff]
  %v367 = vld [vmem:[%s3 + $0x318] sm:$0xff]
  %v368 = vld [vmem:[%s3 + $0x320] sm:$0xff]
  %v369 = vld [vmem:[%s3 + $0x328] sm:$0xff]
  %v370 = vld [vmem:[%s3 + $0x330] sm:$0xff]
  %v371 = vld [vmem:[%s3 + $0x338] sm:$0xff]
  %v372 = vld [vmem:[%s3 + $0x340] sm:$0xff]
  %v373 = vld [vmem:[%s3 + $0x348] sm:$0xff]
  %v374 = vld [vmem:[%s3 + $0x350] sm:$0xff]
  %v375 = vld [vmem:[%s3 + $0x358] sm:$0xff]
  %v376 = vld [vmem:[%s3 + $0x360] sm:$0xff]
  %v377 = vld [vmem:[%s3 + $0x368] sm:$0xff]
  %v378 = vld [vmem:[%s3 + $0x370] sm:$0xff]
  %v379 = vld [vmem:[%s3 + $0x378] sm:$0xff]
  %v380 = vld [vmem:[%s3 + $0x380] sm:$0xff]
  %v381 = vld [vmem:[%s3 + $0x388] sm:$0xff]
  %v382 = vld [vmem:[%s3 + $0x390] sm:$0xff]
  %v383 = vld [vmem:[%s3 + $0x398] sm:$0xff]
  %v384 = vld [vmem:[%s3 + $0x3a0] sm:$0xff]
  %v385 = vld [vmem:[%s3 + $0x3a8] sm:$0xff]
  %v386 = vld [vmem:[%s3 + $0x3b0] sm:$0xff]
  %v387 = vld [vmem:[%s3 + $0x3b8] sm:$0xff]
  %v388 = vld [vmem:[%s3 + $0x3c0] sm:$0xff]
  %v389 = vld [vmem:[%s3 + $0x3c8] sm:$0xff]
  %v390 = vld [vmem:[%s3 + $0x3d0] sm:$0xff]
  %v391 = vld [vmem:[%s3 + $0x3d8] sm:$0xff]
  %v392 = vld [vmem:[%s3 + $0x3e0] sm:$0xff]
  %v393 = vld [vmem:[%s3 + $0x3e8] sm:$0xff]
  %v394 = vld [vmem:[%s3 + $0x3f0] sm:$0xff]
  %v395 = vld [vmem:[%s3 + $0x3f8] sm:$0xff]
  %v396 = vld [vmem:[%s4] sm:$0x1]
  %v398 = vlaneseq
  %v399 = vshrl.u32 %v398, 7
  %v400 = vsub.s32 0, %v399
  %v401 = vrot.slane %v396, %v400
  %403 = vmatprep.subr.mxu0 0.0
  %404 = vmatpush1.msra.mxu0 %v283
  %405 = vmatprep.subr.mxu0 0.0
  %406 = vmatpush1.msra.mxu0 %v282
  %407 = vmatprep.subr.mxu0 0.0
  %408 = vmatpush1.msra.mxu0 %v281
  %409 = vmatprep.subr.mxu0 0.0
  %410 = vmatpush1.msra.mxu0 %v280
  %411 = vmatprep.subr.mxu0 0.0
  %412 = vmatpush1.msra.mxu0 %v279
  %413 = vmatprep.subr.mxu0 0.0
  %414 = vmatpush1.msra.mxu0 %v278
  %415 = vmatprep.subr.mxu0 0.0
  %416 = vmatpush1.msra.mxu0 %v277
  %417 = vmatprep.subr.mxu0 0.0
  %418 = vmatpush1.msra.mxu0 %v276
  %419 = vmatprep.subr.mxu0 0.0
  %420 = vmatpush1.msra.mxu0 %v275
  %421 = vmatprep.subr.mxu0 0.0
  %422 = vmatpush1.msra.mxu0 %v274
  %423 = vmatprep.subr.mxu0 0.0
  %424 = vmatpush1.msra.mxu0 %v273
  %425 = vmatprep.subr.mxu0 0.0
  %426 = vmatpush1.msra.mxu0 %v272
  %427 = vmatprep.subr.mxu0 0.0
  %428 = vmatpush1.msra.mxu0 %v271
  %429 = vmatprep.subr.mxu0 0.0
  %430 = vmatpush1.msra.mxu0 %v270
  %431 = vmatprep.subr.mxu0 0.0
  %432 = vmatpush1.msra.mxu0 %v269
  %433 = vmatprep.subr.mxu0 0.0
  %434 = vmatpush1.msra.mxu0 %v268
  %435 = vmatprep.subr.mxu0 0.0
  %436 = vmatpush2.msra.mxu0 %v299
  %437 = vmatprep.subr.mxu0 0.0
  %438 = vmatpush2.msra.mxu0 %v298
  %439 = vmatprep.subr.mxu0 0.0
  %440 = vmatpush2.msra.mxu0 %v297
  %441 = vmatprep.subr.mxu0 0.0
  %442 = vmatpush2.msra.mxu0 %v296
  %443 = vmatprep.subr.mxu0 0.0
  %444 = vmatpush2.msra.mxu0 %v295
  %445 = vmatprep.subr.mxu0 0.0
  %446 = vmatpush2.msra.mxu0 %v294
  %447 = vmatprep.subr.mxu0 0.0
  %448 = vmatpush2.msra.mxu0 %v293
  %449 = vmatprep.subr.mxu0 0.0
  %450 = vmatpush2.msra.mxu0 %v292
  %451 = vmatprep.subr.mxu0 0.0
  %452 = vmatpush2.msra.mxu0 %v291
  %453 = vmatprep.subr.mxu0 0.0
  %454 = vmatpush2.msra.mxu0 %v290
  %455 = vmatprep.subr.mxu0 0.0
  %456 = vmatpush2.msra.mxu0 %v289
  %457 = vmatprep.subr.mxu0 0.0
  %458 = vmatpush2.msra.mxu0 %v288
  %459 = vmatprep.subr.mxu0 0.0
  %460 = vmatpush2.msra.mxu0 %v287
  %461 = vmatprep.subr.mxu0 0.0
  %462 = vmatpush2.msra.mxu0 %v286
  %463 = vmatprep.subr.mxu0 0.0
  %464 = vmatpush2.msra.mxu0 %v285
  %465 = vmatprep.subr.mxu0 0.0
  %466 = vmatpush2.msra.mxu0 %v284
  %467 = vmatprep.mubr.f32.mxu0 %v264
  %468 = vmatmul.mubr.f32.gmra.mxu0 %v240
  %v469 = vpop.f32.mrf.mxu0
  %v470 = vadd.f32 %v401, %v469
  %v471 = vpop.f32.mrf.mxu0
  %472 = vdwg.mxu0
  %473 = vmatprep.subr.mxu0 0.0
  %474 = vmatpush1.msra.mxu0 %v315
  %475 = vmatprep.subr.mxu0 0.0
  %476 = vmatpush1.msra.mxu0 %v314
  %477 = vmatprep.subr.mxu0 0.0
  %478 = vmatpush1.msra.mxu0 %v313
  %479 = vmatprep.subr.mxu0 0.0
  %480 = vmatpush1.msra.mxu0 %v312
  %481 = vmatprep.subr.mxu0 0.0
  %482 = vmatpush1.msra.mxu0 %v311
  %483 = vmatprep.subr.mxu0 0.0
  %484 = vmatpush1.msra.mxu0 %v310
  %485 = vmatprep.subr.mxu0 0.0
  %486 = vmatpush1.msra.mxu0 %v309
  %487 = vmatprep.subr.mxu0 0.0
  %488 = vmatpush1.msra.mxu0 %v308
  %489 = vmatprep.subr.mxu0 0.0
  %490 = vmatpush1.msra.mxu0 %v307
  %491 = vmatprep.subr.mxu0 0.0
  %492 = vmatpush1.msra.mxu0 %v306
  %493 = vmatprep.subr.mxu0 0.0
  %494 = vmatpush1.msra.mxu0 %v305
  %495 = vmatprep.subr.mxu0 0.0
  %496 = vmatpush1.msra.mxu0 %v304
  %497 = vmatprep.subr.mxu0 0.0
  %498 = vmatpush1.msra.mxu0 %v303
  %499 = vmatprep.subr.mxu0 0.0
  %500 = vmatpush1.msra.mxu0 %v302
  %501 = vmatprep.subr.mxu0 0.0
  %502 = vmatpush1.msra.mxu0 %v301
  %503 = vmatprep.subr.mxu0 0.0
  %504 = vmatpush1.msra.mxu0 %v300
  %505 = vmatprep.subr.mxu0 0.0
  %506 = vmatpush2.msra.mxu0 %v331
  %507 = vmatprep.subr.mxu0 0.0
  %508 = vmatpush2.msra.mxu0 %v330
  %509 = vmatprep.subr.mxu0 0.0
  %510 = vmatpush2.msra.mxu0 %v329
  %511 = vmatprep.subr.mxu0 0.0
  %512 = vmatpush2.msra.mxu0 %v328
  %513 = vmatprep.subr.mxu0 0.0
  %514 = vmatpush2.msra.mxu0 %v327
  %515 = vmatprep.subr.mxu0 0.0
  %516 = vmatpush2.msra.mxu0 %v326
  %517 = vmatprep.subr.mxu0 0.0
  %518 = vmatpush2.msra.mxu0 %v325
  %519 = vmatprep.subr.mxu0 0.0
  %520 = vmatpush2.msra.mxu0 %v324
  %521 = vmatprep.subr.mxu0 0.0
  %522 = vmatpush2.msra.mxu0 %v323
  %523 = vmatprep.subr.mxu0 0.0
  %524 = vmatpush2.msra.mxu0 %v322
  %525 = vmatprep.subr.mxu0 0.0
  %526 = vmatpush2.msra.mxu0 %v321
  %527 = vmatprep.subr.mxu0 0.0
  %528 = vmatpush2.msra.mxu0 %v320
  %529 = vmatprep.subr.mxu0 0.0
  %530 = vmatpush2.msra.mxu0 %v319
  %531 = vmatprep.subr.mxu0 0.0
  %532 = vmatpush2.msra.mxu0 %v318
  %533 = vmatprep.subr.mxu0 0.0
  %534 = vmatpush2.msra.mxu0 %v317
  %535 = vmatprep.subr.mxu0 0.0
  %536 = vmatpush2.msra.mxu0 %v316
  %537 = vmatprep.mubr.f32.mxu0 %v265
  %538 = vmatmul.mubr.f32.gmra.mxu0 %v247
  %v539 = vpop.f32.mrf.mxu0
  %v540 = vadd.f32 %v470, %v539
  %v541 = vpop.f32.mrf.mxu0
  %542 = vdwg.mxu0
  %543 = vmatprep.subr.mxu0 0.0
  %544 = vmatpush1.msra.mxu0 %v347
  %545 = vmatprep.subr.mxu0 0.0
  %546 = vmatpush1.msra.mxu0 %v346
  %547 = vmatprep.subr.mxu0 0.0
  %548 = vmatpush1.msra.mxu0 %v345
  %549 = vmatprep.subr.mxu0 0.0
  %550 = vmatpush1.msra.mxu0 %v344
  %551 = vmatprep.subr.mxu0 0.0
  %552 = vmatpush1.msra.mxu0 %v343
  %553 = vmatprep.subr.mxu0 0.0
  %554 = vmatpush1.msra.mxu0 %v342
  %555 = vmatprep.subr.mxu0 0.0
  %556 = vmatpush1.msra.mxu0 %v341
  %557 = vmatprep.subr.mxu0 0.0
  %558 = vmatpush1.msra.mxu0 %v340
  %559 = vmatprep.subr.mxu0 0.0
  %560 = vmatpush1.msra.mxu0 %v339
  %561 = vmatprep.subr.mxu0 0.0
  %562 = vmatpush1.msra.mxu0 %v338
  %563 = vmatprep.subr.mxu0 0.0
  %564 = vmatpush1.msra.mxu0 %v337
  %565 = vmatprep.subr.mxu0 0.0
  %566 = vmatpush1.msra.mxu0 %v336
  %567 = vmatprep.subr.mxu0 0.0
  %568 = vmatpush1.msra.mxu0 %v335
  %569 = vmatprep.subr.mxu0 0.0
  %570 = vmatpush1.msra.mxu0 %v334
  %571 = vmatprep.subr.mxu0 0.0
  %572 = vmatpush1.msra.mxu0 %v333
  %573 = vmatprep.subr.mxu0 0.0
  %574 = vmatpush1.msra.mxu0 %v332
  %575 = vmatprep.subr.mxu0 0.0
  %576 = vmatpush2.msra.mxu0 %v363
  %577 = vmatprep.subr.mxu0 0.0
  %578 = vmatpush2.msra.mxu0 %v362
  %579 = vmatprep.subr.mxu0 0.0
  %580 = vmatpush2.msra.mxu0 %v361
  %581 = vmatprep.subr.mxu0 0.0
  %582 = vmatpush2.msra.mxu0 %v360
  %583 = vmatprep.subr.mxu0 0.0
  %584 = vmatpush2.msra.mxu0 %v359
  %585 = vmatprep.subr.mxu0 0.0
  %586 = vmatpush2.msra.mxu0 %v358
  %587 = vmatprep.subr.mxu0 0.0
  %588 = vmatpush2.msra.mxu0 %v357
  %589 = vmatprep.subr.mxu0 0.0
  %590 = vmatpush2.msra.mxu0 %v356
  %591 = vmatprep.subr.mxu0 0.0
  %592 = vmatpush2.msra.mxu0 %v355
  %593 = vmatprep.subr.mxu0 0.0
  %594 = vmatpush2.msra.mxu0 %v354
  %595 = vmatprep.subr.mxu0 0.0
  %596 = vmatpush2.msra.mxu0 %v353
  %597 = vmatprep.subr.mxu0 0.0
  %598 = vmatpush2.msra.mxu0 %v352
  %599 = vmatprep.subr.mxu0 0.0
  %600 = vmatpush2.msra.mxu0 %v351
  %601 = vmatprep.subr.mxu0 0.0
  %602 = vmatpush2.msra.mxu0 %v350
  %603 = vmatprep.subr.mxu0 0.0
  %604 = vmatpush2.msra.mxu0 %v349
  %605 = vmatprep.subr.mxu0 0.0
  %606 = vmatpush2.msra.mxu0 %v348
  %607 = vmatprep.mubr.f32.mxu0 %v266
  %608 = vmatmul.mubr.f32.gmra.mxu0 %v256
  %v609 = vpop.f32.mrf.mxu0
  %v610 = vadd.f32 %v540, %v609
  %v611 = vpop.f32.mrf.mxu0
  %612 = vdwg.mxu0
  %613 = vmatprep.subr.mxu0 0.0
  %614 = vmatpush1.msra.mxu0 %v379
  %615 = vmatprep.subr.mxu0 0.0
  %616 = vmatpush1.msra.mxu0 %v378
  %617 = vmatprep.subr.mxu0 0.0
  %618 = vmatpush1.msra.mxu0 %v377
  %619 = vmatprep.subr.mxu0 0.0
  %620 = vmatpush1.msra.mxu0 %v376
  %621 = vmatprep.subr.mxu0 0.0
  %622 = vmatpush1.msra.mxu0 %v375
  %623 = vmatprep.subr.mxu0 0.0
  %624 = vmatpush1.msra.mxu0 %v374
  %625 = vmatprep.subr.mxu0 0.0
  %626 = vmatpush1.msra.mxu0 %v373
  %627 = vmatprep.subr.mxu0 0.0
  %628 = vmatpush1.msra.mxu0 %v372
  %629 = vmatprep.subr.mxu0 0.0
  %630 = vmatpush1.msra.mxu0 %v371
  %631 = vmatprep.subr.mxu0 0.0
  %632 = vmatpush1.msra.mxu0 %v370
  %633 = vmatprep.subr.mxu0 0.0
  %634 = vmatpush1.msra.mxu0 %v369
  %635 = vmatprep.subr.mxu0 0.0
  %636 = vmatpush1.msra.mxu0 %v368
  %637 = vmatprep.subr.mxu0 0.0
  %638 = vmatpush1.msra.mxu0 %v367
  %639 = vmatprep.subr.mxu0 0.0
  %640 = vmatpush1.msra.mxu0 %v366
  %641 = vmatprep.subr.mxu0 0.0
  %642 = vmatpush1.msra.mxu0 %v365
  %643 = vmatprep.subr.mxu0 0.0
  %644 = vmatpush1.msra.mxu0 %v364
  %645 = vmatprep.subr.mxu0 0.0
  %646 = vmatpush2.msra.mxu0 %v395
  %647 = vmatprep.subr.mxu0 0.0
  %648 = vmatpush2.msra.mxu0 %v394
  %649 = vmatprep.subr.mxu0 0.0
  %650 = vmatpush2.msra.mxu0 %v393
  %651 = vmatprep.subr.mxu0 0.0
  %652 = vmatpush2.msra.mxu0 %v392
  %653 = vmatprep.subr.mxu0 0.0
  %654 = vmatpush2.msra.mxu0 %v391
  %655 = vmatprep.subr.mxu0 0.0
  %656 = vmatpush2.msra.mxu0 %v390
  %657 = vmatprep.subr.mxu0 0.0
  %658 = vmatpush2.msra.mxu0 %v389
  %659 = vmatprep.subr.mxu0 0.0
  %660 = vmatpush2.msra.mxu0 %v388
  %661 = vmatprep.subr.mxu0 0.0
  %662 = vmatpush2.msra.mxu0 %v387
  %663 = vmatprep.subr.mxu0 0.0
  %664 = vmatpush2.msra.mxu0 %v386
  %665 = vmatprep.subr.mxu0 0.0
  %666 = vmatpush2.msra.mxu0 %v385
  %667 = vmatprep.subr.mxu0 0.0
  %668 = vmatpush2.msra.mxu0 %v384
  %669 = vmatprep.subr.mxu0 0.0
  %670 = vmatpush2.msra.mxu0 %v383
  %671 = vmatprep.subr.mxu0 0.0
  %672 = vmatpush2.msra.mxu0 %v382
  %673 = vmatprep.subr.mxu0 0.0
  %674 = vmatpush2.msra.mxu0 %v381
  %675 = vmatprep.subr.mxu0 0.0
  %676 = vmatpush2.msra.mxu0 %v380
  %677 = vmatprep.mubr.f32.mxu0 %v267
  %678 = vmatmul.mubr.f32.gmra.mxu0 %v263
  %v679 = vpop.f32.mrf.mxu0
  %v680 = vadd.f32 %v610, %v679
  %v681 = vpop.f32.mrf.mxu0
  %682 = vdwg.mxu0
  %v683 = vmax.f32 %v680, 0.0
  %v684 = vld [vmem:[%s5] sm:$0xff]
  %v685 = vld [vmem:[%s5 + $0x8] sm:$0xff]
  %v686 = vld [vmem:[%s5 + $0x10] sm:$0xff]
  %v687 = vld [vmem:[%s5 + $0x18] sm:$0xff]
  %v688 = vld [vmem:[%s5 + $0x20] sm:$0xff]
  %v689 = vld [vmem:[%s5 + $0x28] sm:$0xff]
  %v690 = vld [vmem:[%s5 + $0x30] sm:$0xff]
  %v691 = vld [vmem:[%s5 + $0x38] sm:$0xff]
  %v692 = vld [vmem:[%s6] sm:$0x1]
  %v694 = vlaneseq
  %v695 = vshrl.u32 %v694, 7
  %v696 = vsub.s32 0, %v695
  %v697 = vrot.slane %v692, %v696
  %vm699 = vcmask 523264
  %v701 = vsel %vm699, %v683, 0
  %703 = vmatprep.subr.mxu0 0.0
  %704 = vmatpush1.msra.mxu0 0.0
  %705 = vmatprep.subr.mxu0 0.0
  %706 = vmatpush1.msra.mxu0 0.0
  %707 = vmatprep.subr.mxu0 0.0
  %708 = vmatpush1.msra.mxu0 0.0
  %709 = vmatprep.subr.mxu0 0.0
  %710 = vmatpush1.msra.mxu0 0.0
  %711 = vmatprep.subr.mxu0 0.0
  %712 = vmatpush1.msra.mxu0 0.0
  %713 = vmatprep.subr.mxu0 0.0
  %714 = vmatpush1.msra.mxu0 0.0
  %715 = vmatprep.subr.mxu0 0.0
  %716 = vmatpush1.msra.mxu0 0.0
  %717 = vmatprep.subr.mxu0 0.0
  %718 = vmatpush1.msra.mxu0 0.0
  %719 = vmatprep.subr.mxu0 0.0
  %720 = vmatpush1.msra.mxu0 %v691
  %721 = vmatprep.subr.mxu0 0.0
  %722 = vmatpush1.msra.mxu0 %v690
  %723 = vmatprep.subr.mxu0 0.0
  %724 = vmatpush1.msra.mxu0 %v689
  %725 = vmatprep.subr.mxu0 0.0
  %726 = vmatpush1.msra.mxu0 %v688
  %727 = vmatprep.subr.mxu0 0.0
  %728 = vmatpush1.msra.mxu0 %v687
  %729 = vmatprep.subr.mxu0 0.0
  %730 = vmatpush1.msra.mxu0 %v686
  %731 = vmatprep.subr.mxu0 0.0
  %732 = vmatpush1.msra.mxu0 %v685
  %733 = vmatprep.subr.mxu0 0.0
  %734 = vmatpush1.msra.mxu0 %v684
  %735 = vmatprep.subr.mxu0 0.0
  %736 = vmatpush2.msra.mxu0 0.0
  %737 = vmatprep.subr.mxu0 0.0
  %738 = vmatpush2.msra.mxu0 0.0
  %739 = vmatprep.subr.mxu0 0.0
  %740 = vmatpush2.msra.mxu0 0.0
  %741 = vmatprep.subr.mxu0 0.0
  %742 = vmatpush2.msra.mxu0 0.0
  %743 = vmatprep.subr.mxu0 0.0
  %744 = vmatpush2.msra.mxu0 0.0
  %745 = vmatprep.subr.mxu0 0.0
  %746 = vmatpush2.msra.mxu0 0.0
  %747 = vmatprep.subr.mxu0 0.0
  %748 = vmatpush2.msra.mxu0 0.0
  %749 = vmatprep.subr.mxu0 0.0
  %750 = vmatpush2.msra.mxu0 0.0
  %751 = vmatprep.subr.mxu0 0.0
  %752 = vmatpush2.msra.mxu0 0.0
  %753 = vmatprep.subr.mxu0 0.0
  %754 = vmatpush2.msra.mxu0 0.0
  %755 = vmatprep.subr.mxu0 0.0
  %756 = vmatpush2.msra.mxu0 0.0
  %757 = vmatprep.subr.mxu0 0.0
  %758 = vmatpush2.msra.mxu0 0.0
  %759 = vmatprep.subr.mxu0 0.0
  %760 = vmatpush2.msra.mxu0 0.0
  %761 = vmatprep.subr.mxu0 0.0
  %762 = vmatpush2.msra.mxu0 0.0
  %763 = vmatprep.subr.mxu0 0.0
  %764 = vmatpush2.msra.mxu0 0.0
  %765 = vmatprep.subr.mxu0 0.0
  %766 = vmatpush2.msra.mxu0 0.0
  %767 = vmatprep.mubr.f32.mxu0 0.0
  %768 = vmatmul.mubr.f32.gmra.mxu0 %v701
  %v769 = vpop.f32.mrf.mxu0
  %v770 = vadd.f32 %v697, %v769
  %v771 = vpop.f32.mrf.mxu0
  %772 = vdwg.mxu0
  %v773 = vmax.f32 %v770, 0.0
  %v774 = vld [vmem:[%s7] sm:$0xff]
  %v775 = vld [vmem:[%s7 + $0x8] sm:$0xff]
  %v776 = vld [vmem:[%s7 + $0x10] sm:$0xff]
  %v777 = vld [vmem:[%s7 + $0x18] sm:$0xff]
  %v778 = vld [vmem:[#allocation2] sm:$0x1]
  %v780 = vlaneseq
  %v781 = vshrl.u32 %v780, 7
  %v782 = vsub.s32 0, %v781
  %v783 = vrot.slane %v778, %v782
  %vm785 = vcmask 261120
  %v787 = vsel %vm785, %v773, 0
  %789 = vmatprep.subr.mxu0 0.0
  %790 = vmatpush1.msra.mxu0 0.0
  %791 = vmatprep.subr.mxu0 0.0
  %792 = vmatpush1.msra.mxu0 0.0
  %793 = vmatprep.subr.mxu0 0.0
  %794 = vmatpush1.msra.mxu0 0.0
  %795 = vmatprep.subr.mxu0 0.0
  %796 = vmatpush1.msra.mxu0 0.0
  %797 = vmatprep.subr.mxu0 0.0
  %798 = vmatpush1.msra.mxu0 0.0
  %799 = vmatprep.subr.mxu0 0.0
  %800 = vmatpush1.msra.mxu0 0.0
  %801 = vmatprep.subr.mxu0 0.0
  %802 = vmatpush1.msra.mxu0 0.0
  %803 = vmatprep.subr.mxu0 0.0
  %804 = vmatpush1.msra.mxu0 0.0
  %805 = vmatprep.subr.mxu0 0.0
  %806 = vmatpush1.msra.mxu0 0.0
  %807 = vmatprep.subr.mxu0 0.0
  %808 = vmatpush1.msra.mxu0 0.0
  %809 = vmatprep.subr.mxu0 0.0
  %810 = vmatpush1.msra.mxu0 0.0
  %811 = vmatprep.subr.mxu0 0.0
  %812 = vmatpush1.msra.mxu0 0.0
  %813 = vmatprep.subr.mxu0 0.0
  %814 = vmatpush1.msra.mxu0 %v777
  %815 = vmatprep.subr.mxu0 0.0
  %816 = vmatpush1.msra.mxu0 %v776
  %817 = vmatprep.subr.mxu0 0.0
  %818 = vmatpush1.msra.mxu0 %v775
  %819 = vmatprep.subr.mxu0 0.0
  %820 = vmatpush1.msra.mxu0 %v774
  %821 = vmatprep.subr.mxu0 0.0
  %822 = vmatpush2.msra.mxu0 0.0
  %823 = vmatprep.subr.mxu0 0.0
  %824 = vmatpush2.msra.mxu0 0.0
  %825 = vmatprep.subr.mxu0 0.0
  %826 = vmatpush2.msra.mxu0 0.0
  %827 = vmatprep.subr.mxu0 0.0
  %828 = vmatpush2.msra.mxu0 0.0
  %829 = vmatprep.subr.mxu0 0.0
  %830 = vmatpush2.msra.mxu0 0.0
  %831 = vmatprep.subr.mxu0 0.0
  %832 = vmatpush2.msra.mxu0 0.0
  %833 = vmatprep.subr.mxu0 0.0
  %834 = vmatpush2.msra.mxu0 0.0
  %835 = vmatprep.subr.mxu0 0.0
  %836 = vmatpush2.msra.mxu0 0.0
  %837 = vmatprep.subr.mxu0 0.0
  %838 = vmatpush2.msra.mxu0 0.0
  %839 = vmatprep.subr.mxu0 0.0
  %840 = vmatpush2.msra.mxu0 0.0
  %841 = vmatprep.subr.mxu0 0.0
  %842 = vmatpush2.msra.mxu0 0.0
  %843 = vmatprep.subr.mxu0 0.0
  %844 = vmatpush2.msra.mxu0 0.0
  %845 = vmatprep.subr.mxu0 0.0
  %846 = vmatpush2.msra.mxu0 0.0
  %847 = vmatprep.subr.mxu0 0.0
  %848 = vmatpush2.msra.mxu0 0.0
  %849 = vmatprep.subr.mxu0 0.0
  %850 = vmatpush2.msra.mxu0 0.0
  %851 = vmatprep.subr.mxu0 0.0
  %852 = vmatpush2.msra.mxu0 0.0
  %853 = vmatprep.mubr.f32.mxu0 0.0
  %854 = vmatmul.mubr.f32.gmra.mxu0 %v787
  %v855 = vpop.f32.mrf.mxu0
  %v856 = vadd.f32 %v783, %v855
  %v857 = vpop.f32.mrf.mxu0
  %858 = vdwg.mxu0
  %vm859 = vcmask 1024
  %860 = vst.msk [vmem:[%s9] sm:$0x3] %vm859, %v856
  // Predicated region
  $region38: #{tpu_custom_call.1} parent=0 // pred_check
    _
  $region39: #{tpu_custom_call.1} parent=0 // pred_check_branch
    %862 = sbr.rel (0) target = $region41
  $region40: #{tpu_custom_call.1} parent=0 // pred_region
    _
  $region41: #{tpu_custom_call.1} parent=0 // pred_fallthru
    _
  // Predicated region
  $region42: #{tpu_custom_call.1} parent=0 // pred_check
    _
  $region43: #{tpu_custom_call.1} parent=0 // pred_check_branch
    %864 = sbr.rel (0) target = $region45
  $region44: #{tpu_custom_call.1} parent=0 // pred_region
    _
  $region45: #{tpu_custom_call.1} parent=0 // pred_fallthru
    _

</llo_original>
